<compile_context>
chip_gen: v5e
topology: v5e:2x2
jax: 0.10.0
libtpu: 0.0.40
codegen_flags: <defaults>
</compile_context>

<pallas_src>
import jax
import jax.numpy as jnp
from jax import lax
from jax.experimental import pallas as pl
from jax.experimental.pallas import tpu as pltpu


def _round_up(n, m):
    return ((n + m - 1) // m) * m


def output_network_kernel(x_ref, w1T_ref, b1_ref, w2_ref, b2_ref, o_ref):
    """One batch tile: Linear(F->H) + ReLU + Dropout(eval=identity) + Linear(H->1).

    x arrives in natural [TILE_B, F] layout; the contraction keeps the batch on
    the lane axis of the result so the [1, TILE_B] output store is lane-dense.
    """
    # Layer 1 on the MXU: contract F on both operands ->  [H, TILE_B], f32 acc.
    #   w1T: [H, F],  x: [TILE_B, F]
    hT = lax.dot_general(
        w1T_ref[...], x_ref[...],
        dimension_numbers=(((1,), (1,)), ((), ())),
        preferred_element_type=jnp.float32)
    # Bias + ReLU in f32 on the VPU.
    hT = jnp.maximum(hT + b1_ref[...], 0.0)
    # TODO(synk): nn.Dropout(p) is identity at inference; training-mode masking
    # (pltpu.prng_seed / prng_random_bits) is not implemented here.
    # Layer 2 (H -> 1) on VPU (multiply) + XLU (sublane reduce); MXU stays free.
    yT = jnp.sum(hT * w2_ref[...], axis=0, keepdims=True) + b2_ref[0]  # [1, TILE_B]
    o_ref[...] = yT.astype(o_ref.dtype)


def output_network(x, w1, b1, w2, b2, *, tile_b=8192):
    """x: [B, F]; w1: [F, H]; b1: [H]; w2: [H]; b2: scalar.  Returns [B, 1]."""
    B, F = x.shape
    H = w1.shape[1]
    out_dtype = x.dtype

    # Big tiles amortize per-grid-step overhead, but keep >=2 grid steps when
    # possible so the "parallel" batch axis can shard across v7x's two TCs.
    # (Default 8192-row f32 tile is ~1 MB x 2 buffers + ~1 MB hT intermediate,
    #  well under the scoped-VMEM default on every generation; sweep upward and
    #  raise vmem_limit_bytes if you go past ~16K rows on v5e.)
    tile_b = max(128, min(tile_b, _round_up(pl.cdiv(B, 2), 128)))
    grid = (pl.cdiv(B, tile_b),)   # ragged last block; stale lanes are clipped

    # Tiny layout plumbing on the 2 KB weights only (x is untouched in HBM).
    w1T = w1.T.astype(jnp.float32)                   # [H, F]
    b1c = b1.reshape(H, 1).astype(jnp.float32)       # [H, 1]  (broadcasts over lanes)
    w2c = w2.reshape(H, 1).astype(jnp.float32)       # [H, 1]
    b2s = jnp.asarray(b2, jnp.float32).reshape(1)    # SMEM scalar

    out = pl.pallas_call(
        output_network_kernel,
        out_shape=jax.ShapeDtypeStruct((1, B), out_dtype),
        grid=grid,
        in_specs=[
            # Streamed activations, natural layout: one batch tile per step
            # (double-buffered by BlockSpec pipelining).
            pl.BlockSpec((tile_b, F), lambda i: (i, 0)),
            # Weights / biases: constant index_map -> VMEM-resident across steps.
            pl.BlockSpec((H, F), lambda i: (0, 0)),
            pl.BlockSpec((H, 1), lambda i: (0, 0)),
            pl.BlockSpec((H, 1), lambda i: (0, 0)),
            # Output-layer bias as an SMEM scalar.
            pl.BlockSpec(memory_space=pltpu.MemorySpace.SMEM),
        ],
        out_specs=pl.BlockSpec((1, tile_b), lambda i: (0, i)),  # lane-dense output
        compiler_params=pltpu.CompilerParams(
            dimension_semantics=("parallel",)),
    )(x, w1T, b1c, w2c, b2s)

    # [1, B] -> [B, 1] (row-major identical; free reshape).
    return out.reshape(B, 1)


def reference(x, w1, b1, w2, b2):
    # True f32 reference (the kernel keeps f32 operands end-to-end).
    h = jnp.maximum(x @ w1 + b1[None, :], 0.0)
    return jnp.sum(h * w2[None, :], axis=-1, keepdims=True) + b2


if __name__ == "__main__":
    # hparams implied by __init__:
    #   shortcut='concat', message_dim=[16, 16] -> fully_connected_dim = 32
    #   final_dim = 32, dropout = 0.1 (identity at inference)
    B = 1000                      # not tile-aligned -> exercises ragged block + 2-step grid
    fully_connected_dim = 32
    final_dim = 32

    key = jax.random.PRNGKey(0)
    kx, kw1, kb1, kw2, kb2 = jax.random.split(key, 5)

    x = jax.random.normal(kx, (B, fully_connected_dim), dtype=jnp.float32)
    # Linear weights stored pre-transposed as [in, out] so compute is x @ W.
    w1 = jax.random.normal(kw1, (fully_connected_dim, final_dim), jnp.float32) * 0.1
    b1 = jax.random.normal(kb1, (final_dim,), jnp.float32) * 0.1
    w2 = jax.random.normal(kw2, (final_dim,), jnp.float32) * 0.1
    b2 = jax.random.normal(kb2, (), jnp.float32) * 0.1

    out = jax.block_until_ready(output_network(x, w1, b1, w2, b2))
    ref = reference(x, w1, b1, w2, b2)

    assert out.shape == (B, 1), out.shape
    # Tolerance covers possible reduced-precision MXU passes for f32 operands.
    assert jnp.allclose(out, ref, atol=1e-2, rtol=1e-2), (
        "mismatch vs reference, max abs err = "
        f"{float(jnp.max(jnp.abs(out - ref)))}")

    print("KERNEL_OK")
</pallas_src>

<mosaic_0001>
module attributes {stable_mosaic.version = 11 : i64} {
  func.func @output_network_kernel(%arg0: i32, %arg1: memref<512x32xf32, #tpu.memory_space<vmem>>, %arg2: memref<32x32xf32, #tpu.memory_space<vmem>>, %arg3: memref<32x1xf32, #tpu.memory_space<vmem>>, %arg4: memref<32x1xf32, #tpu.memory_space<vmem>>, %arg5: memref<1xf32, #tpu.memory_space<smem>>, %arg6: memref<1x512xf32, #tpu.memory_space<vmem>>) attributes {dimension_semantics = [#tpu.dimension_semantics<parallel>], iteration_bounds = array<i64: 2>, scalar_prefetch = 0 : i64, scratch_operands = 0 : i64, tpu.core_type = #tpu.core_type<tc>, window_params = [{transform_indices = @transform_0, window_bounds = array<i64: 512, 32>}, {pipeline_mode = #tpu.pipeline_mode<synchronous>, transform_indices = @transform_1, window_bounds = array<i64: 32, 32>}, {pipeline_mode = #tpu.pipeline_mode<synchronous>, transform_indices = @transform_2, window_bounds = array<i64: 32, 1>}, {pipeline_mode = #tpu.pipeline_mode<synchronous>, transform_indices = @transform_3, window_bounds = array<i64: 32, 1>}, {transform_indices = @transform_4, window_bounds = array<i64: 1>}, {transform_indices = @transform_5, window_bounds = array<i64: 1, 512>}]} {
    %c0 = arith.constant 0 : index
    %c0_0 = arith.constant 0 : index
    %0 = vector.load %arg2[%c0, %c0_0] : memref<32x32xf32, #tpu.memory_space<vmem>>, vector<32x32xf32>
    %c0_1 = arith.constant 0 : index
    %c0_2 = arith.constant 0 : index
    %1 = vector.load %arg1[%c0_1, %c0_2] : memref<512x32xf32, #tpu.memory_space<vmem>>, vector<512x32xf32>
    %cst = arith.constant dense<0.000000e+00> : vector<32x512xf32>
    %2 = tpu.matmul %0, %1, %cst {dimension_numbers = #tpu.dot_dimension_numbers<[1], [1], [0], [0], [0, 0, 1, 0], [], []>} : vector<32x32xf32>, vector<512x32xf32>, vector<32x512xf32> -> vector<32x512xf32>
    %c0_3 = arith.constant 0 : index
    %c0_4 = arith.constant 0 : index
    %3 = vector.load %arg3[%c0_3, %c0_4] : memref<32x1xf32, #tpu.memory_space<vmem>>, vector<32x1xf32>
    %4 = vector.broadcast %3 : vector<32x1xf32> to vector<32x512xf32>
    %5 = arith.addf %2, %4 : vector<32x512xf32>
    %cst_5 = arith.constant 0.000000e+00 : f32
    %6 = vector.broadcast %cst_5 : f32 to vector<32x512xf32>
    %7 = arith.maximumf %5, %6 : vector<32x512xf32>
    %c0_6 = arith.constant 0 : index
    %c0_7 = arith.constant 0 : index
    %8 = vector.load %arg4[%c0_6, %c0_7] : memref<32x1xf32, #tpu.memory_space<vmem>>, vector<32x1xf32>
    %9 = vector.broadcast %8 : vector<32x1xf32> to vector<32x512xf32>
    %10 = arith.mulf %7, %9 : vector<32x512xf32>
    %cst_8 = arith.constant dense<0.000000e+00> : vector<512xf32>
    %11 = vector.multi_reduction <add>, %10, %cst_8 [0] : vector<32x512xf32> to vector<512xf32>
    %12 = vector.shape_cast %11 : vector<512xf32> to vector<1x512xf32>
    %c0_9 = arith.constant 0 : index
    %13 = memref.load %arg5[%c0_9] : memref<1xf32, #tpu.memory_space<smem>>
    %14 = vector.broadcast %13 : f32 to vector<1x512xf32>
    %15 = arith.addf %12, %14 : vector<1x512xf32>
    %c0_10 = arith.constant 0 : index
    %c0_11 = arith.constant 0 : index
    %16 = vector.load %arg6[%c0_10, %c0_11] : memref<1x512xf32, #tpu.memory_space<vmem>>, vector<1x512xf32>
    tpu.vector_store %arg6[%c0_10, %c0_11], %15 {strides = array<i32>} : memref<1x512xf32, #tpu.memory_space<vmem>>, vector<1x512xf32>,
    return
  }
  func.func @transform_0(%arg0: i32) -> (i32, i32) {
    %c0_i32 = arith.constant 0 : i32
    %c0_i32_0 = arith.constant 0 : i32
    return %arg0, %c0_i32 : i32, i32
  }
  func.func @transform_1(%arg0: i32) -> (i32, i32) {
    %c0_i32 = arith.constant 0 : i32
    %c0_i32_0 = arith.constant 0 : i32
    %c0_i32_1 = arith.constant 0 : i32
    return %c0_i32, %c0_i32_0 : i32, i32
  }
  func.func @transform_2(%arg0: i32) -> (i32, i32) {
    %c0_i32 = arith.constant 0 : i32
    %c0_i32_0 = arith.constant 0 : i32
    %c0_i32_1 = arith.constant 0 : i32
    return %c0_i32, %c0_i32_0 : i32, i32
  }
  func.func @transform_3(%arg0: i32) -> (i32, i32) {
    %c0_i32 = arith.constant 0 : i32
    %c0_i32_0 = arith.constant 0 : i32
    %c0_i32_1 = arith.constant 0 : i32
    return %c0_i32, %c0_i32_0 : i32, i32
  }
  func.func @transform_4(%arg0: i32) -> i32 {
    %c0_i32 = arith.constant 0 : i32
    %c0_i32_0 = arith.constant 0 : i32
    return %c0_i32 : i32
  }
  func.func @transform_5(%arg0: i32) -> (i32, i32) {
    %c0_i32 = arith.constant 0 : i32
    %c0_i32_0 = arith.constant 0 : i32
    return %c0_i32, %arg0 : i32, i32
  }
}

</mosaic_0001>

<llo_original>
// kernel: tpu_custom_call.1
$region0: #{tpu_custom_call.1}
  #allocation0 [shape = 'u32[]', space=smem, size = 0x4, offset = 0x4, fixed_abs, tag = 'smem constant byte address 0x4 - core index']
  #allocation1 [shape = 'u32[72,128]{1,0:T(1,128)}', space=vmem, size = 0x9000, scoped, tag = 'internal scratch']
  #allocation2 [shape = 'f32[1]{0:T(128)S(6)}', space=smem, size = 0x200, scoped, tag = 'scoped memory for tpu_custom_call.1']
  %s0 = inlined_call_operand.vmem [shape: f32[1000,32], index: 0, kind: input, shape index: {}]
  %s1 = inlined_call_operand.vmem [shape: f32[32,32], index: 1, kind: input, shape index: {}]
  %s2 = inlined_call_operand.vmem [shape: f32[32,1], index: 2, kind: input, shape index: {}]
  %s3 = inlined_call_operand.vmem [shape: f32[32,1], index: 3, kind: input, shape index: {}]
  %s4 = inlined_call_operand.<no memory space> [shape: f32[1], index: 4, kind: input, shape index: {}]
  %s5 = inlined_call_operand.hbm [shape: f32[1,1000], index: 5, kind: output, shape index: {}]
  %s6 = sld [smem:[#allocation0]]
  $region53: #{tpu_custom_call.1} parent=0
    _
  %s8 = ssub.s32 1, %s6
  %s9 = scalar_select 0, %s8, %s6
  %10 = sst [smem:[#allocation2]] %s4
  $region1: #{tpu_custom_call.1} parent=0
    #allocation3 [shape = 'u8[4096]{0}', space=vmem, size = 0x1000, scoped, tag = 'output window, operand 0']
    #allocation4 [shape = 's32[2]{0}', space=sflag, size = 0x8, scoped, tag = 'scoped memory for tpu_custom_call.1']
    %11 = vsyncpa [#allocation4], 0
    %s12 = scalar_lea.sflag [#allocation4], 1
    %13 = vsyncpa %s12, 0
    loop: start=0, step=1, limit=4
    $region2: #{tpu_custom_call.1} parent=1 // loop_pre_header
      _
    $region3: #{tpu_custom_call.1} parent=1 // loop_header
      %s15 = sphi 0, %s19
      %p16 = scmp.ge.s32.totalorder %s15, 4
      %s25 = sphi 0, %s27
      %s28 = sphi 0, %s25
      %s29 = sphi 0, %s28
      %s45 = sphi 0, %s29
      %s49 = sphi 0, %s49
      %s51 = sphi 0, %s49
      %s52 = sphi 0, %s51
      %s66 = sphi 0, %s52
      %s70 = sphi 0, %s70
      %s72 = sphi 0, %s70
      %s73 = sphi 0, %s72
      %s87 = sphi 0, %s73
      %s91 = sphi 0, %s91
      %s93 = sphi 0, %s91
      %s94 = sphi 0, %s93
      %s108 = sphi 0, %s94
      %s112 = sphi 0, %s112
      %s114 = sphi 0, %s112
      %s115 = sphi 0, %s114
      %s129 = sphi 0, %s115
      %s135 = sphi 0, %s137
      %s138 = sphi 0, %s135
      %s139 = sphi 0, %s138
      %s155 = sphi 0, %s139
    $region4: #{tpu_custom_call.1} parent=1 // loop_header_branch
      %18 = sbr.rel (%p16) target = $region8
    $region5: #{tpu_custom_call.1} parent=1 // loop_body
      %s20 = ssub.s32 %s15, 1
      %s21 = ssub.s32 %s15, 2
      %s22 = sadd.s32 %s15, 1
      %s23 = ssub.s32 %s15, %s22
      %p24 = scmp.eq.s32.totalorder %s23, 0
      %s26 = sadd.s32 %s25, 1
      %s27 = scalar_select %p24, %s25, %s26
      %p30 = pneg %p24
      %p31 = scmp.eq.s32.totalorder %s15, 1
      %p32 = por %p30, %p31
      %p33 = scmp.ne.s32.totalorder %s25, %s28
      %p34 = scmp.eq.s32.totalorder %s15, 0
      %p35 = por %p33, %p34
      %p36 = scmp.ne.s32.totalorder %s25, %s28
      %p37 = scmp.eq.s32.totalorder %s20, 1
      %p38 = por %p36, %p37
      %p39 = scmp.ne.s32.totalorder %s28, %s29
      %p40 = scmp.eq.s32.totalorder %s20, 0
      %p41 = por %p39, %p40
      %p42 = scmp.ne.s32.totalorder %s28, %s29
      %p43 = scmp.eq.s32.totalorder %s21, 1
      %p44 = por %p42, %p43
      %p46 = scmp.ne.s32.totalorder %s29, %s45
      %p47 = scmp.eq.s32.totalorder %s21, 0
      %p48 = por %p46, %p47
      %s50 = sadd.s32 %s49, 1
      %p53 = scmp.eq.s32.totalorder %s15, 1
      %p54 = scmp.ne.s32.totalorder %s49, %s51
      %p55 = scmp.eq.s32.totalorder %s15, 0
      %p56 = por %p54, %p55
      %p57 = scmp.ne.s32.totalorder %s49, %s51
      %p58 = scmp.eq.s32.totalorder %s20, 1
      %p59 = por %p57, %p58
      %p60 = scmp.ne.s32.totalorder %s51, %s52
      %p61 = scmp.eq.s32.totalorder %s20, 0
      %p62 = por %p60, %p61
      %p63 = scmp.ne.s32.totalorder %s51, %s52
      %p64 = scmp.eq.s32.totalorder %s21, 1
      %p65 = por %p63, %p64
      %p67 = scmp.ne.s32.totalorder %s52, %s66
      %p68 = scmp.eq.s32.totalorder %s21, 0
      %p69 = por %p67, %p68
      %s71 = sadd.s32 %s70, 1
      %p74 = scmp.eq.s32.totalorder %s15, 1
      %p75 = scmp.ne.s32.totalorder %s70, %s72
      %p76 = scmp.eq.s32.totalorder %s15, 0
      %p77 = por %p75, %p76
      %p78 = scmp.ne.s32.totalorder %s70, %s72
      %p79 = scmp.eq.s32.totalorder %s20, 1
      %p80 = por %p78, %p79
      %p81 = scmp.ne.s32.totalorder %s72, %s73
      %p82 = scmp.eq.s32.totalorder %s20, 0
      %p83 = por %p81, %p82
      %p84 = scmp.ne.s32.totalorder %s72, %s73
      %p85 = scmp.eq.s32.totalorder %s21, 1
      %p86 = por %p84, %p85
      %p88 = scmp.ne.s32.totalorder %s73, %s87
      %p89 = scmp.eq.s32.totalorder %s21, 0
      %p90 = por %p88, %p89
      %s92 = sadd.s32 %s91, 1
      %p95 = scmp.eq.s32.totalorder %s15, 1
      %p96 = scmp.ne.s32.totalorder %s91, %s93
      %p97 = scmp.eq.s32.totalorder %s15, 0
      %p98 = por %p96, %p97
      %p99 = scmp.ne.s32.totalorder %s91, %s93
      %p100 = scmp.eq.s32.totalorder %s20, 1
      %p101 = por %p99, %p100
      %p102 = scmp.ne.s32.totalorder %s93, %s94
      %p103 = scmp.eq.s32.totalorder %s20, 0
      %p104 = por %p102, %p103
      %p105 = scmp.ne.s32.totalorder %s93, %s94
      %p106 = scmp.eq.s32.totalorder %s21, 1
      %p107 = por %p105, %p106
      %p109 = scmp.ne.s32.totalorder %s94, %s108
      %p110 = scmp.eq.s32.totalorder %s21, 0
      %p111 = por %p109, %p110
      %s113 = sadd.s32 %s112, 1
      %p116 = scmp.eq.s32.totalorder %s15, 1
      %p117 = scmp.ne.s32.totalorder %s112, %s114
      %p118 = scmp.eq.s32.totalorder %s15, 0
      %p119 = por %p117, %p118
      %p120 = scmp.ne.s32.totalorder %s112, %s114
      %p121 = scmp.eq.s32.totalorder %s20, 1
      %p122 = por %p120, %p121
      %p123 = scmp.ne.s32.totalorder %s114, %s115
      %p124 = scmp.eq.s32.totalorder %s20, 0
      %p125 = por %p123, %p124
      %p126 = scmp.ne.s32.totalorder %s114, %s115
      %p127 = scmp.eq.s32.totalorder %s21, 1
      %p128 = por %p126, %p127
      %p130 = scmp.ne.s32.totalorder %s115, %s129
      %p131 = scmp.eq.s32.totalorder %s21, 0
      %p132 = por %p130, %p131
      %s133 = ssub.s32 %s15, %s22
      %p134 = scmp.eq.s32.totalorder %s133, 0
      %s136 = sadd.s32 %s135, 1
      %s137 = scalar_select %p134, %s135, %s136
      %p140 = pneg %p134
      %p141 = scmp.eq.s32.totalorder %s15, 1
      %p142 = por %p140, %p141
      %p143 = scmp.ne.s32.totalorder %s135, %s138
      %p144 = scmp.eq.s32.totalorder %s15, 0
      %p145 = por %p143, %p144
      %p146 = scmp.ne.s32.totalorder %s135, %s138
      %p147 = scmp.eq.s32.totalorder %s20, 1
      %p148 = por %p146, %p147
      %p149 = scmp.ne.s32.totalorder %s138, %s139
      %p150 = scmp.eq.s32.totalorder %s20, 0
      %p151 = por %p149, %p150
      %p152 = scmp.ne.s32.totalorder %s138, %s139
      %p153 = scmp.eq.s32.totalorder %s21, 1
      %p154 = por %p152, %p153
      %p156 = scmp.ne.s32.totalorder %s139, %s155
      %p157 = scmp.eq.s32.totalorder %s21, 0
      %p158 = por %p156, %p157
      %p159 = scmp.le.s32.totalorder 1, %s15
      %p160 = scmp.lt.s32.totalorder %s15, 3
      %p161 = pnand %p159, %p160
      %p162 = pneg %p161
      // Predicated region
      $region9: #{tpu_custom_call.1} parent=5 // pred_check
        _
      $region10: #{tpu_custom_call.1} parent=5 // pred_check_branch
        %164 = sbr.rel (%p161) target = $region12
      $region11: #{tpu_custom_call.1} parent=5 // pred_region
        %s165 = ssub.s32 %s15, 1
        // Predicated region
        $region13: #{tpu_custom_call.1} parent=11 // pred_check
          %p166 = pneg %p62
        $region14: #{tpu_custom_call.1} parent=11 // pred_check_branch
          %168 = sbr.rel (%p166) target = $region16
        $region15: #{tpu_custom_call.1} parent=11 // pred_region
          _
        $region16: #{tpu_custom_call.1} parent=11 // pred_fallthru
          _
        // Predicated region
        $region17: #{tpu_custom_call.1} parent=11 // pred_check
          %p169 = pneg %p83
        $region18: #{tpu_custom_call.1} parent=11 // pred_check_branch
          %171 = sbr.rel (%p169) target = $region20
        $region19: #{tpu_custom_call.1} parent=11 // pred_region
          _
        $region20: #{tpu_custom_call.1} parent=11 // pred_fallthru
          _
        // Predicated region
        $region21: #{tpu_custom_call.1} parent=11 // pred_check
          %p172 = pneg %p104
        $region22: #{tpu_custom_call.1} parent=11 // pred_check_branch
          %174 = sbr.rel (%p172) target = $region24
        $region23: #{tpu_custom_call.1} parent=11 // pred_region
          _
        $region24: #{tpu_custom_call.1} parent=11 // pred_fallthru
          _
        // Predicated region
        $region25: #{tpu_custom_call.1} parent=11 // pred_check
          %p175 = pneg %p125
        $region26: #{tpu_custom_call.1} parent=11 // pred_check_branch
          %177 = sbr.rel (%p175) target = $region28
        $region27: #{tpu_custom_call.1} parent=11 // pred_region
          _
        $region28: #{tpu_custom_call.1} parent=11 // pred_fallthru
          _
      $region12: #{tpu_custom_call.1} parent=5 // pred_fallthru
        _
      %p178 = scmp.lt.s32.totalorder %s15, 2
      // Predicated region
      $region29: #{tpu_custom_call.1} parent=5 // pred_check
        %p179 = pneg %p178
      $region30: #{tpu_custom_call.1} parent=5 // pred_check_branch
        %181 = sbr.rel (%p179) target = $region32
      $region31: #{tpu_custom_call.1} parent=5 // pred_region
        // Predicated region
        $region33: #{tpu_custom_call.1} parent=31 // pred_check
          %p182 = pneg %p35
        $region34: #{tpu_custom_call.1} parent=31 // pred_check_branch
          %184 = sbr.rel (%p182) target = $region36
        $region35: #{tpu_custom_call.1} parent=31 // pred_region
          %s185 = smul.u32 64, %s15
          %s186 = ssub.s32 125, %s185
          %p187 = scmp.lt.s32.totalorder %s186, 64
          %s188 = scalar_select %p187, %s186, 64
          %s189 = smul.u32 8, %s188
          %p190 = scmp.lt.s32.totalorder %s185, 124
          %s191 = scalar_select %p190, %s185, 124
          %s192 = smul.addr %s191, 8
          %s193 = scalar_lea.vmem %s0, %s192
          %s194 = smul.u32 64, %s15
          %s195 = ssub.s32 125, %s194
          %p196 = scmp.lt.s32.totalorder %s195, 64
          %s197 = scalar_select %p196, %s195, 64
          %s198 = smul.u32 8, %s197
        $region36: #{tpu_custom_call.1} parent=31 // pred_fallthru
          _
      $region32: #{tpu_custom_call.1} parent=5 // pred_fallthru
        _
      %p199 = scmp.le.s32.totalorder 1, %s15
      %p200 = scmp.lt.s32.totalorder %s15, 3
      %p201 = pnand %p199, %p200
      %p202 = pneg %p201
      // Predicated region
      $region37: #{tpu_custom_call.1} parent=5 // pred_check
        _
      $region38: #{tpu_custom_call.1} parent=5 // pred_check_branch
        %204 = sbr.rel (%p201) target = $region40
      $region39: #{tpu_custom_call.1} parent=5 // pred_region
        %s205 = ssub.s32 %s15, 1
        %s206 = smul.u32 64, %s20
        %s207 = ssub.s32 125, %s206
        %p208 = scmp.lt.s32.totalorder %s207, 64
        %s209 = scalar_select %p208, %s207, 64
        %s210 = smul.u32 8, %s209
        %p211 = scmp.lt.s32.totalorder %s206, 124
        %s212 = scalar_select %p211, %s206, 124
        %s213 = smul.addr %s212, 8
        %s214 = scalar_lea.vmem %s0, %s213
        %p215 = pneg %p41
        %p216 = pneg %p38
        %p217 = pneg %p62
        %p218 = pneg %p59
        %p219 = pneg %p83
        %p220 = pneg %p80
        %p221 = pneg %p104
        %p222 = pneg %p101
        %p223 = pneg %p125
        %p224 = pneg %p122
        %p225 = pneg %p151
        %p226 = pneg %p148
        %s227 = sand.u32 %s138, 1
        %s228 = scalar_lea.sflag [#allocation4], %s227
        %s229 = sand.u32 %s138, 1
        %s230 = smul.addr %s229, 4
        %s231 = scalar_lea.vmem [#allocation3], %s230
        %s232 = smul.u32 64, %s20
        %s233 = ssub.s32 125, %s232
        %p234 = scmp.lt.s32.totalorder %s233, 64
        %s235 = scalar_select %p234, %s233, 64
        %s236 = smul.u32 8, %s235
        %p237 = scmp.lt.s32.totalorder %s232, 124
        %s238 = scalar_select %p237, %s232, 124
        %s239 = smul.addr %s238, 8
        %s240 = scalar_lea.vmem %s0, %s239
        %s241 = smul.u32 64, %s20
        %s242 = ssub.s32 125, %s241
        %p243 = scmp.lt.s32.totalorder %s242, 64
        %s244 = scalar_select %p243, %s242, 64
        %s245 = smul.u32 8, %s244
        %s246 = smul.u32 4, %s20
        %v247 = vld [vmem:[%s1] sm:$0xff]
        %v248 = vld [vmem:[%s1 + $0x8] sm:$0xff]
        %v249 = vld [vmem:[%s1 + $0x10] sm:$0xff]
        %v250 = vld [vmem:[%s1 + $0x18] sm:$0xff]
        %v251 = vld [vmem:[%s240] sm:$0xff]
        %v252 = vld [vmem:[%s240 + $0x8] sm:$0xff]
        %v253 = vld [vmem:[%s240 + $0x10] sm:$0xff]
        %v254 = vld [vmem:[%s240 + $0x18] sm:$0xff]
        %v255 = vld [vmem:[%s240 + $0x20] sm:$0xff]
        %v256 = vld [vmem:[%s240 + $0x28] sm:$0xff]
        %v257 = vld [vmem:[%s240 + $0x30] sm:$0xff]
        %v258 = vld [vmem:[%s240 + $0x38] sm:$0xff]
        %v259 = vld [vmem:[%s240 + $0x40] sm:$0xff]
        %v260 = vld [vmem:[%s240 + $0x48] sm:$0xff]
        %v261 = vld [vmem:[%s240 + $0x50] sm:$0xff]
        %v262 = vld [vmem:[%s240 + $0x58] sm:$0xff]
        %v263 = vld [vmem:[%s240 + $0x60] sm:$0xff]
        %v264 = vld [vmem:[%s240 + $0x68] sm:$0xff]
        %v265 = vld [vmem:[%s240 + $0x70] sm:$0xff]
        %v266 = vld [vmem:[%s240 + $0x78] sm:$0xff]
        %v267 = vld [vmem:[%s240 + $0x80] sm:$0xff]
        %v268 = vld [vmem:[%s240 + $0x88] sm:$0xff]
        %v269 = vld [vmem:[%s240 + $0x90] sm:$0xff]
        %v270 = vld [vmem:[%s240 + $0x98] sm:$0xff]
        %v271 = vld [vmem:[%s240 + $0xa0] sm:$0xff]
        %v272 = vld [vmem:[%s240 + $0xa8] sm:$0xff]
        %v273 = vld [vmem:[%s240 + $0xb0] sm:$0xff]
        %v274 = vld [vmem:[%s240 + $0xb8] sm:$0xff]
        %v275 = vld [vmem:[%s240 + $0xc0] sm:$0xff]
        %v276 = vld [vmem:[%s240 + $0xc8] sm:$0xff]
        %v277 = vld [vmem:[%s240 + $0xd0] sm:$0xff]
        %v278 = vld [vmem:[%s240 + $0xd8] sm:$0xff]
        %v279 = vld [vmem:[%s240 + $0xe0] sm:$0xff]
        %v280 = vld [vmem:[%s240 + $0xe8] sm:$0xff]
        %v281 = vld [vmem:[%s240 + $0xf0] sm:$0xff]
        %v282 = vld [vmem:[%s240 + $0xf8] sm:$0xff]
        %v283 = vld [vmem:[%s240 + $0x100] sm:$0xff]
        %v284 = vld [vmem:[%s240 + $0x108] sm:$0xff]
        %v285 = vld [vmem:[%s240 + $0x110] sm:$0xff]
        %v286 = vld [vmem:[%s240 + $0x118] sm:$0xff]
        %v287 = vld [vmem:[%s240 + $0x120] sm:$0xff]
        %v288 = vld [vmem:[%s240 + $0x128] sm:$0xff]
        %v289 = vld [vmem:[%s240 + $0x130] sm:$0xff]
        %v290 = vld [vmem:[%s240 + $0x138] sm:$0xff]
        %v291 = vld [vmem:[%s240 + $0x140] sm:$0xff]
        %v292 = vld [vmem:[%s240 + $0x148] sm:$0xff]
        %v293 = vld [vmem:[%s240 + $0x150] sm:$0xff]
        %v294 = vld [vmem:[%s240 + $0x158] sm:$0xff]
        %v295 = vld [vmem:[%s240 + $0x160] sm:$0xff]
        %v296 = vld [vmem:[%s240 + $0x168] sm:$0xff]
        %v297 = vld [vmem:[%s240 + $0x170] sm:$0xff]
        %v298 = vld [vmem:[%s240 + $0x178] sm:$0xff]
        %v299 = vld [vmem:[%s240 + $0x180] sm:$0xff]
        %v300 = vld [vmem:[%s240 + $0x188] sm:$0xff]
        %v301 = vld [vmem:[%s240 + $0x190] sm:$0xff]
        %v302 = vld [vmem:[%s240 + $0x198] sm:$0xff]
        %v303 = vld [vmem:[%s240 + $0x1a0] sm:$0xff]
        %v304 = vld [vmem:[%s240 + $0x1a8] sm:$0xff]
        %v305 = vld [vmem:[%s240 + $0x1b0] sm:$0xff]
        %v306 = vld [vmem:[%s240 + $0x1b8] sm:$0xff]
        %v307 = vld [vmem:[%s240 + $0x1c0] sm:$0xff]
        %v308 = vld [vmem:[%s240 + $0x1c8] sm:$0xff]
        %v309 = vld [vmem:[%s240 + $0x1d0] sm:$0xff]
        %v310 = vld [vmem:[%s240 + $0x1d8] sm:$0xff]
        %v311 = vld [vmem:[%s240 + $0x1e0] sm:$0xff]
        %v312 = vld [vmem:[%s240 + $0x1e8] sm:$0xff]
        %v313 = vld [vmem:[%s240 + $0x1f0] sm:$0xff]
        %v314 = vld [vmem:[%s240 + $0x1f8] sm:$0xff]
        %v315 = vld [vmem:[%s2] sm:$0xff]
        %v316 = vld [vmem:[%s2 + $0x8] sm:$0xff]
        %v317 = vld [vmem:[%s2 + $0x10] sm:$0xff]
        %v318 = vld [vmem:[%s2 + $0x18] sm:$0xff]
        %320 = vset.pattern.permute.xlu0 0
        %321 = vperm.xlu0 %320, %v315
        %v322 = vpop.permute.xlu0 %321
        %325 = vset.pattern.permute.xlu0 0
        %326 = vperm.xlu0 %325, %v316
        %v327 = vpop.permute.xlu0 %326
        %330 = vset.pattern.permute.xlu0 0
        %331 = vperm.xlu0 %330, %v317
        %v332 = vpop.permute.xlu0 %331
        %335 = vset.pattern.permute.xlu0 0
        %336 = vperm.xlu0 %335, %v318
        %v337 = vpop.permute.xlu0 %336
        %vm339 = vcmask 261120
        %v341 = vsel %vm339, %v247, 0
        %v344 = vsel %vm339, %v248, 0
        %v347 = vsel %vm339, %v249, 0
        %v350 = vsel %vm339, %v250, 0
        %v353 = vsel %vm339, %v251, 0
        %v356 = vsel %vm339, %v252, 0
        %v359 = vsel %vm339, %v253, 0
        %v362 = vsel %vm339, %v254, 0
        %v365 = vsel %vm339, %v255, 0
        %v368 = vsel %vm339, %v256, 0
        %v371 = vsel %vm339, %v257, 0
        %v374 = vsel %vm339, %v258, 0
        %v377 = vsel %vm339, %v259, 0
        %v380 = vsel %vm339, %v260, 0
        %v383 = vsel %vm339, %v261, 0
        %v386 = vsel %vm339, %v262, 0
        %v389 = vsel %vm339, %v263, 0
        %v392 = vsel %vm339, %v264, 0
        %v395 = vsel %vm339, %v265, 0
        %v398 = vsel %vm339, %v266, 0
        %v401 = vsel %vm339, %v267, 0
        %v404 = vsel %vm339, %v268, 0
        %v407 = vsel %vm339, %v269, 0
        %v410 = vsel %vm339, %v270, 0
        %v413 = vsel %vm339, %v271, 0
        %v416 = vsel %vm339, %v272, 0
        %v419 = vsel %vm339, %v273, 0
        %v422 = vsel %vm339, %v274, 0
        %v425 = vsel %vm339, %v275, 0
        %v428 = vsel %vm339, %v276, 0
        %v431 = vsel %vm339, %v277, 0
        %v434 = vsel %vm339, %v278, 0
        %v437 = vsel %vm339, %v279, 0
        %v440 = vsel %vm339, %v280, 0
        %v443 = vsel %vm339, %v281, 0
        %v446 = vsel %vm339, %v282, 0
        %v449 = vsel %vm339, %v283, 0
        %v452 = vsel %vm339, %v284, 0
        %v455 = vsel %vm339, %v285, 0
        %v458 = vsel %vm339, %v286, 0
        %v461 = vsel %vm339, %v287, 0
        %v464 = vsel %vm339, %v288, 0
        %v467 = vsel %vm339, %v289, 0
        %v470 = vsel %vm339, %v290, 0
        %v473 = vsel %vm339, %v291, 0
        %v476 = vsel %vm339, %v292, 0
        %v479 = vsel %vm339, %v293, 0
        %v482 = vsel %vm339, %v294, 0
        %v485 = vsel %vm339, %v295, 0
        %v488 = vsel %vm339, %v296, 0
        %v491 = vsel %vm339, %v297, 0
        %v494 = vsel %vm339, %v298, 0
        %v497 = vsel %vm339, %v299, 0
        %v500 = vsel %vm339, %v300, 0
        %v503 = vsel %vm339, %v301, 0
        %v506 = vsel %vm339, %v302, 0
        %v509 = vsel %vm339, %v303, 0
        %v512 = vsel %vm339, %v304, 0
        %v515 = vsel %vm339, %v305, 0
        %v518 = vsel %vm339, %v306, 0
        %v521 = vsel %vm339, %v307, 0
        %v524 = vsel %vm339, %v308, 0
        %v527 = vsel %vm339, %v309, 0
        %v530 = vsel %vm339, %v310, 0
        %v533 = vsel %vm339, %v311, 0
        %v536 = vsel %vm339, %v312, 0
        %v539 = vsel %vm339, %v313, 0
        %v542 = vsel %vm339, %v314, 0
        %544 = vmatpush.xpose.msra.mxu0 %v398
        %545 = vmatpush.xpose.msra.mxu0 %v395
        %546 = vmatpush.xpose.msra.mxu0 %v392
        %547 = vmatpush.xpose.msra.mxu0 %v389
        %548 = vmatpush.xpose.msra.mxu0 %v386
        %549 = vmatpush.xpose.msra.mxu0 %v383
        %550 = vmatpush.xpose.msra.mxu0 %v380
        %551 = vmatpush.xpose.msra.mxu0 %v377
        %552 = vmatpush.xpose.msra.mxu0 %v374
        %553 = vmatpush.xpose.msra.mxu0 %v371
        %554 = vmatpush.xpose.msra.mxu0 %v368
        %555 = vmatpush.xpose.msra.mxu0 %v365
        %556 = vmatpush.xpose.msra.mxu0 %v362
        %557 = vmatpush.xpose.msra.mxu0 %v359
        %558 = vmatpush.xpose.msra.mxu0 %v356
        %559 = vmatpush.xpose.msra.mxu0 %v353
        %560 = vmatmul.f32.gmra.mxu0 %v341
        %v561 = vpop.f32.mrf.mxu0
        %v562 = vadd.f32 %v322, %v561
        %563 = vmatmul.f32.gmra.mxu0 %v344
        %v564 = vpop.f32.mrf.mxu0
        %v565 = vadd.f32 %v327, %v564
        %566 = vmatmul.f32.gmra.mxu0 %v347
        %v567 = vpop.f32.mrf.mxu0
        %v568 = vadd.f32 %v332, %v567
        %569 = vmatmul.f32.gmra.mxu0 %v350
        %v570 = vpop.f32.mrf.mxu0
        %v571 = vadd.f32 %v337, %v570
        %572 = vdwg.mxu0
        %573 = vmatpush.xpose.msra.mxu0 %v446
        %574 = vmatpush.xpose.msra.mxu0 %v443
        %575 = vmatpush.xpose.msra.mxu0 %v440
        %576 = vmatpush.xpose.msra.mxu0 %v437
        %577 = vmatpush.xpose.msra.mxu0 %v434
        %578 = vmatpush.xpose.msra.mxu0 %v431
        %579 = vmatpush.xpose.msra.mxu0 %v428
        %580 = vmatpush.xpose.msra.mxu0 %v425
        %581 = vmatpush.xpose.msra.mxu0 %v422
        %582 = vmatpush.xpose.msra.mxu0 %v419
        %583 = vmatpush.xpose.msra.mxu0 %v416
        %584 = vmatpush.xpose.msra.mxu0 %v413
        %585 = vmatpush.xpose.msra.mxu0 %v410
        %586 = vmatpush.xpose.msra.mxu0 %v407
        %587 = vmatpush.xpose.msra.mxu0 %v404
        %588 = vmatpush.xpose.msra.mxu0 %v401
        %589 = vmatmul.f32.gmra.mxu0 %v341
        %v590 = vpop.f32.mrf.mxu0
        %v591 = vadd.f32 %v322, %v590
        %592 = vmatmul.f32.gmra.mxu0 %v344
        %v593 = vpop.f32.mrf.mxu0
        %v594 = vadd.f32 %v327, %v593
        %595 = vmatmul.f32.gmra.mxu0 %v347
        %v596 = vpop.f32.mrf.mxu0
        %v597 = vadd.f32 %v332, %v596
        %598 = vmatmul.f32.gmra.mxu0 %v350
        %v599 = vpop.f32.mrf.mxu0
        %v600 = vadd.f32 %v337, %v599
        %601 = vdwg.mxu0
        %602 = vmatpush.xpose.msra.mxu0 %v494
        %603 = vmatpush.xpose.msra.mxu0 %v491
        %604 = vmatpush.xpose.msra.mxu0 %v488
        %605 = vmatpush.xpose.msra.mxu0 %v485
        %606 = vmatpush.xpose.msra.mxu0 %v482
        %607 = vmatpush.xpose.msra.mxu0 %v479
        %608 = vmatpush.xpose.msra.mxu0 %v476
        %609 = vmatpush.xpose.msra.mxu0 %v473
        %610 = vmatpush.xpose.msra.mxu0 %v470
        %611 = vmatpush.xpose.msra.mxu0 %v467
        %612 = vmatpush.xpose.msra.mxu0 %v464
        %613 = vmatpush.xpose.msra.mxu0 %v461
        %614 = vmatpush.xpose.msra.mxu0 %v458
        %615 = vmatpush.xpose.msra.mxu0 %v455
        %616 = vmatpush.xpose.msra.mxu0 %v452
        %617 = vmatpush.xpose.msra.mxu0 %v449
        %618 = vmatmul.f32.gmra.mxu0 %v341
        %v619 = vpop.f32.mrf.mxu0
        %v620 = vadd.f32 %v322, %v619
        %621 = vmatmul.f32.gmra.mxu0 %v344
        %v622 = vpop.f32.mrf.mxu0
        %v623 = vadd.f32 %v327, %v622
        %624 = vmatmul.f32.gmra.mxu0 %v347
        %v625 = vpop.f32.mrf.mxu0
        %v626 = vadd.f32 %v332, %v625
        %627 = vmatmul.f32.gmra.mxu0 %v350
        %v628 = vpop.f32.mrf.mxu0
        %v629 = vadd.f32 %v337, %v628
        %630 = vdwg.mxu0
        %631 = vmatpush.xpose.msra.mxu0 %v542
        %632 = vmatpush.xpose.msra.mxu0 %v539
        %633 = vmatpush.xpose.msra.mxu0 %v536
        %634 = vmatpush.xpose.msra.mxu0 %v533
        %635 = vmatpush.xpose.msra.mxu0 %v530
        %636 = vmatpush.xpose.msra.mxu0 %v527
        %637 = vmatpush.xpose.msra.mxu0 %v524
        %638 = vmatpush.xpose.msra.mxu0 %v521
        %639 = vmatpush.xpose.msra.mxu0 %v518
        %640 = vmatpush.xpose.msra.mxu0 %v515
        %641 = vmatpush.xpose.msra.mxu0 %v512
        %642 = vmatpush.xpose.msra.mxu0 %v509
        %643 = vmatpush.xpose.msra.mxu0 %v506
        %644 = vmatpush.xpose.msra.mxu0 %v503
        %645 = vmatpush.xpose.msra.mxu0 %v500
        %646 = vmatpush.xpose.msra.mxu0 %v497
        %647 = vmatmul.f32.gmra.mxu0 %v341
        %v648 = vpop.f32.mrf.mxu0
        %v649 = vadd.f32 %v322, %v648
        %650 = vmatmul.f32.gmra.mxu0 %v344
        %v651 = vpop.f32.mrf.mxu0
        %v652 = vadd.f32 %v327, %v651
        %653 = vmatmul.f32.gmra.mxu0 %v347
        %v654 = vpop.f32.mrf.mxu0
        %v655 = vadd.f32 %v332, %v654
        %656 = vmatmul.f32.gmra.mxu0 %v350
        %v657 = vpop.f32.mrf.mxu0
        %v658 = vadd.f32 %v337, %v657
        %659 = vdwg.mxu0
        %v660 = vmax.f32 %v562, 0.0
        %v661 = vmax.f32 %v591, 0.0
        %v662 = vmax.f32 %v620, 0.0
        %v663 = vmax.f32 %v649, 0.0
        %v664 = vmax.f32 %v565, 0.0
        %v665 = vmax.f32 %v594, 0.0
        %v666 = vmax.f32 %v623, 0.0
        %v667 = vmax.f32 %v652, 0.0
        %v668 = vmax.f32 %v568, 0.0
        %v669 = vmax.f32 %v597, 0.0
        %v670 = vmax.f32 %v626, 0.0
        %v671 = vmax.f32 %v655, 0.0
        %v672 = vmax.f32 %v571, 0.0
        %v673 = vmax.f32 %v600, 0.0
        %v674 = vmax.f32 %v629, 0.0
        %v675 = vmax.f32 %v658, 0.0
        %v676 = vld [vmem:[%s3] sm:$0xff]
        %v677 = vld [vmem:[%s3 + $0x8] sm:$0xff]
        %v678 = vld [vmem:[%s3 + $0x10] sm:$0xff]
        %v679 = vld [vmem:[%s3 + $0x18] sm:$0xff]
        %681 = vset.pattern.permute.xlu0 0
        %682 = vperm.xlu0 %681, %v676
        %v683 = vpop.permute.xlu0 %682
        %686 = vset.pattern.permute.xlu0 0
        %687 = vperm.xlu0 %686, %v677
        %v688 = vpop.permute.xlu0 %687
        %691 = vset.pattern.permute.xlu0 0
        %692 = vperm.xlu0 %691, %v678
        %v693 = vpop.permute.xlu0 %692
        %696 = vset.pattern.permute.xlu0 0
        %697 = vperm.xlu0 %696, %v679
        %v698 = vpop.permute.xlu0 %697
        %v700 = vmul.f32 %v660, %v683
        %v701 = vmul.f32 %v661, %v683
        %v702 = vmul.f32 %v662, %v683
        %v703 = vmul.f32 %v663, %v683
        %v704 = vmul.f32 %v664, %v688
        %v705 = vmul.f32 %v665, %v688
        %v706 = vmul.f32 %v666, %v688
        %v707 = vmul.f32 %v667, %v688
        %v708 = vmul.f32 %v668, %v693
        %v709 = vmul.f32 %v669, %v693
        %v710 = vmul.f32 %v670, %v693
        %v711 = vmul.f32 %v671, %v693
        %v712 = vmul.f32 %v672, %v698
        %v713 = vmul.f32 %v673, %v698
        %v714 = vmul.f32 %v674, %v698
        %v715 = vmul.f32 %v675, %v698
        %v716 = vadd.f32 %v700, %v704
        %v717 = vadd.f32 %v716, %v708
        %v718 = vadd.f32 %v717, %v712
        %v719 = vrot.slane %v718, 4
        %v720 = vadd.f32 %v718, %v719
        %v721 = vrot.slane %v720, 2
        %v722 = vadd.f32 %v720, %v721
        %v723 = vrot.slane %v722, 1
        %v724 = vadd.f32 %v722, %v723
        %v725 = vadd.f32 %v701, %v705
        %v726 = vadd.f32 %v725, %v709
        %v727 = vadd.f32 %v726, %v713
        %v728 = vrot.slane %v727, 4
        %v729 = vadd.f32 %v727, %v728
        %v730 = vrot.slane %v729, 2
        %v731 = vadd.f32 %v729, %v730
        %v732 = vrot.slane %v731, 1
        %v733 = vadd.f32 %v731, %v732
        %v734 = vadd.f32 %v702, %v706
        %v735 = vadd.f32 %v734, %v710
        %v736 = vadd.f32 %v735, %v714
        %v737 = vrot.slane %v736, 4
        %v738 = vadd.f32 %v736, %v737
        %v739 = vrot.slane %v738, 2
        %v740 = vadd.f32 %v738, %v739
        %v741 = vrot.slane %v740, 1
        %v742 = vadd.f32 %v740, %v741
        %v743 = vadd.f32 %v703, %v707
        %v744 = vadd.f32 %v743, %v711
        %v745 = vadd.f32 %v744, %v715
        %v746 = vrot.slane %v745, 4
        %v747 = vadd.f32 %v745, %v746
        %v748 = vrot.slane %v747, 2
        %v749 = vadd.f32 %v747, %v748
        %v750 = vrot.slane %v749, 1
        %v751 = vadd.f32 %v749, %v750
        %s752 = sld [smem:[#allocation2]]
        %v753 = vstv %s752
        %v754 = vadd.f32 %v724, %v753
        %v755 = vadd.f32 %v733, %v753
        %v756 = vadd.f32 %v742, %v753
        %v757 = vadd.f32 %v751, %v753
        %v762 = vrot.slane %v755, 7
        %v763 = vrot.slane %v756, 6
        %v764 = vrot.slane %v757, 5
        %vm765 = vcmask 1040384
        %v766 = vsel %vm765, %v754, %v762
        %vm767 = vcmask 1042434
        %v768 = vsel %vm767, %v763, %v764
        %vm769 = vcmask 1041408
        %v770 = vsel %vm769, %v766, %v768
        %v772 = vlaneseq
        %vm773 = vcmp.ge.s32.totalorder %v772, 0
        %vm774 = vcmp.lt.s32.totalorder %v772, 512
        %vm775 = vmand %vm773, %vm774
        %776 = vst.msk [vmem:[%s231] sm:$0xf] %vm775, %v770
        %s777 = sand.u32 %s138, 1
        %s778 = scalar_lea.sflag [#allocation4], %s777
        %s779 = sand.u32 %s138, 1
        %s780 = smul.addr %s779, 4
        %s781 = scalar_lea.vmem [#allocation3], %s780
        // Predicated region
        $region41: #{tpu_custom_call.1} parent=39 // pred_check
          %p782 = pneg %p148
        $region42: #{tpu_custom_call.1} parent=39 // pred_check_branch
          %784 = sbr.rel (%p782) target = $region44
        $region43: #{tpu_custom_call.1} parent=39 // pred_region
          %s785 = smul.u32 4, %s20
          %787 = vsyncadd %s778, 0
          %s788 = scalar_lea.hbm %s5, %s785
          %s790 = sshll.u32 %s781, 4
          %s791 = int_to_ptr.vmem [resolvable:$true] %s790
          %s792 = sshll.u32 %s788, 4
          %s793 = int_to_ptr.hbm [resolvable:$true] %s792
          %795 = dma.vmem_to_hbm [thread:$0]  %s791, 64, %s793, %s778
        $region44: #{tpu_custom_call.1} parent=39 // pred_fallthru
          _
      $region40: #{tpu_custom_call.1} parent=5 // pred_fallthru
        _
      %p796 = scmp.le.s32.totalorder 2, %s15
      // Predicated region
      $region45: #{tpu_custom_call.1} parent=5 // pred_check
        %p797 = pneg %p796
      $region46: #{tpu_custom_call.1} parent=5 // pred_check_branch
        %799 = sbr.rel (%p797) target = $region48
      $region47: #{tpu_custom_call.1} parent=5 // pred_region
        %s800 = ssub.s32 %s15, 2
        // Predicated region
        $region49: #{tpu_custom_call.1} parent=47 // pred_check
          %p801 = pneg %p154
        $region50: #{tpu_custom_call.1} parent=47 // pred_check_branch
          %803 = sbr.rel (%p801) target = $region52
        $region51: #{tpu_custom_call.1} parent=47 // pred_region
          %s804 = sand.u32 %s139, 1
          %s805 = scalar_lea.sflag [#allocation4], %s804
          %s806 = sand.u32 %s139, 1
          %s807 = smul.addr %s806, 4
          %s808 = scalar_lea.vmem [#allocation3], %s807
          %810 = dma.done %s805, 64
        $region52: #{tpu_custom_call.1} parent=47 // pred_fallthru
          _
      $region48: #{tpu_custom_call.1} parent=5 // pred_fallthru
        _
    $region6: #{tpu_custom_call.1} parent=1 // loop_footer
      %s19 = sadd.s32 1, %s15
    $region7: #{tpu_custom_call.1} parent=1 // loop_footer_branch
      %14 = sbr.rel target = $region3
    $region8: #{tpu_custom_call.1} parent=1 // loop_exit
      _
    %811 = vsyncpa [#allocation4], 1
    %s812 = scalar_lea.sflag [#allocation4], 1
    %813 = vsyncpa %s812, 1

</llo_original>
